<compile_context>
chip_gen: v6e
topology: v6e:2x2x1
jax: 0.10.0
libtpu: 0.0.40
codegen_flags: <defaults>
</compile_context>

<pallas_src>
import functools

import jax
import jax.numpy as jnp
from jax.experimental import pallas as pl
from jax.experimental.pallas import tpu as pltpu


def _round_up(x: int, m: int) -> int:
    return ((x + m - 1) // m) * m


# ----------------------------- fused Pallas kernel --------------------------

def _plain_gnn_kernel(a_ref, x_ref, w_ref, b_ref, o_ref, h_ref, *, n_gcn, tm):
    """Fused GCN stack + final Linear.

    Grid: (n_gcn + 1, n_row_tiles); layer axis outer, row-tile axis inner.

    a_ref: [tm, Np]      row strip of (padded) adjacency
    x_ref: [Np, Fp]      padded input features (constant block, VMEM-resident)
    w_ref: [1, Fp, Fp]   padded weight of the current layer (already (in,out))
    b_ref: [1, 1, Fp]    padded bias of the current layer
    o_ref: [Np, Fp]      padded logits (constant block; flushed once at end)
    h_ref: [2, Np, Fp]   f32 ping-pong scratch holding node features in VMEM
    """
    l = pl.program_id(0)                 # layer index (n_gcn == final Linear)
    i = pl.program_id(1)                 # row-tile index
    row = pl.multiple_of(i * tm, tm)

    # Seed the ping-pong scratch with the input features exactly once.
    @pl.when((l == 0) & (i == 0))
    def _seed():
        h_ref[1] = x_ref[...]            # layer 0 reads slot 1

    w = w_ref[0]                         # [Fp, Fp]
    b = b_ref[0]                         # [1, Fp]

    # ---- GCN layers: H_strip = relu?( (A_strip @ X_prev) @ W + b ) ----------
    @pl.when(l < n_gcn)
    def _gcn():
        src = h_ref[(l + 1) % 2]                                   # [Np, Fp]
        ax = jnp.dot(a_ref[...], src,
                     preferred_element_type=jnp.float32)           # [tm, Fp]
        h = jnp.dot(ax, w, preferred_element_type=jnp.float32) + b
        # ReLU for all GCN layers except the last one (layers[:-1]).
        h = jnp.where(l < n_gcn - 1, jnp.maximum(h, 0.0), h)
        h_ref[l % 2, pl.ds(row, tm), :] = h

    # ---- Final Linear (mlp): O_strip = X_strip @ W + b ----------------------
    @pl.when(l == n_gcn)
    def _mlp():
        src = h_ref[(l + 1) % 2, pl.ds(row, tm), :]                # [tm, Fp]
        o = jnp.dot(src, w, preferred_element_type=jnp.float32) + b
        o_ref[pl.ds(row, tm), :] = o.astype(o_ref.dtype)


# ----------------------------- wrapper ---------------------------------------

def plain_gnn_forward(params, X, A):
    """PlainGNN.forward: GCN stack (ReLU between layers) -> final Linear."""
    conv_ws, conv_bs = params["conv_w"], params["conv_b"]
    n_gcn = len(conv_ws)
    N, input_dim = X.shape
    hid_dim = conv_ws[0].shape[0]
    n_classes = params["mlp_w"].shape[0]

    # Lane-dense padded feature width and row padding / tiling.
    Fp = _round_up(max(input_dim, hid_dim, n_classes), 128)
    Np = _round_up(N, 128)
    tm = min(Np, 256)                    # A row-strip height
    Np = _round_up(Np, tm)
    nt = Np // tm
    L = n_gcn + 1                        # GCN layers + final Linear

    # Pad & stack weights (transposed to (in, out)) and biases.  Zero padding
    # keeps the math exact: padded rows/cols contribute nothing.
    all_w = list(conv_ws) + [params["mlp_w"]]
    all_b = list(conv_bs) + [params["mlp_b"]]
    w_stack = jnp.zeros((L, Fp, Fp), jnp.float32)
    b_stack = jnp.zeros((L, 1, Fp), jnp.float32)
    for li, (w, b) in enumerate(zip(all_w, all_b)):
        fout, fin = w.shape
        w_stack = w_stack.at[li, :fin, :fout].set(w.T.astype(jnp.float32))
        b_stack = b_stack.at[li, 0, :fout].set(b.astype(jnp.float32))

    X_pad = jnp.zeros((Np, Fp), jnp.float32).at[:N, :input_dim].set(
        X.astype(jnp.float32))
    A_pad = jnp.zeros((Np, Np), jnp.float32).at[:N, :N].set(
        A.astype(jnp.float32))

    # Rough VMEM budget (double-buffered blocks + scratch), with headroom,
    # clamped to stay safe on v7x (64 MiB physical VMEM).
    est = 4 * (2 * tm * Np          # A strip (x2 buffers)
               + 2 * Np * Fp        # X block
               + 2 * (Fp * Fp + Fp)  # W + b blocks
               + 2 * Np * Fp        # output block
               + 2 * Np * Fp)       # ping-pong scratch
    vmem_limit = int(min(max(2 * est, 16 * 1024 * 1024), 48 * 1024 * 1024))

    kernel = functools.partial(_plain_gnn_kernel, n_gcn=n_gcn, tm=tm)
    out_pad = pl.pallas_call(
        kernel,
        out_shape=jax.ShapeDtypeStruct((Np, Fp), jnp.float32),
        grid_spec=pltpu.PrefetchScalarGridSpec(
            num_scalar_prefetch=0,
            grid=(L, nt),
            in_specs=[
                pl.BlockSpec((tm, Np), lambda l, i: (i, 0)),         # A strip
                pl.BlockSpec((Np, Fp), lambda l, i: (0, 0)),         # X (resident)
                pl.BlockSpec((1, Fp, Fp), lambda l, i: (l, 0, 0)),   # W_l
                pl.BlockSpec((1, 1, Fp), lambda l, i: (l, 0, 0)),    # b_l
            ],
            out_specs=pl.BlockSpec((Np, Fp), lambda l, i: (0, 0)),   # logits
            scratch_shapes=[pltpu.VMEM((2, Np, Fp), jnp.float32)],
        ),
        compiler_params=pltpu.CompilerParams(
            dimension_semantics=("arbitrary", "arbitrary"),
            vmem_limit_bytes=vmem_limit),
    )(A_pad, X_pad, w_stack, b_stack)

    return out_pad[:N, :n_classes]


# ----------------------------- params ---------------------------------------

def xavier_uniform(key, fan_out, fan_in, dtype=jnp.float32):
    bound = (6.0 / (fan_in + fan_out)) ** 0.5
    return jax.random.uniform(key, (fan_out, fan_in), dtype,
                              minval=-bound, maxval=bound)


def init_plain_gnn(key, input_dim, hid_dim, n_classes, n_layers):
    """Deterministic parameter init mirroring PlainGNN.param_init()."""
    keys = jax.random.split(key, n_layers + 1)
    params = {"conv_w": [], "conv_b": []}
    dims = [input_dim] + [hid_dim] * n_layers
    for li in range(n_layers):
        params["conv_w"].append(
            xavier_uniform(keys[li], dims[li + 1], dims[li]))
        params["conv_b"].append(jnp.zeros((dims[li + 1],), jnp.float32))
    params["mlp_w"] = xavier_uniform(keys[-1], n_classes, hid_dim)
    params["mlp_b"] = jnp.zeros((n_classes,), jnp.float32)
    return params


# ----------------------------- reference (pure JAX) --------------------------

def plain_gnn_reference(params, X, A):
    n_layers = len(params["conv_w"])
    for li in range(n_layers - 1):
        X = jnp.maximum(A @ (X @ params["conv_w"][li].T)
                        + params["conv_b"][li], 0.0)
    X = A @ (X @ params["conv_w"][-1].T) + params["conv_b"][-1]
    return X @ params["mlp_w"].T + params["mlp_b"]


# ----------------------------- main ------------------------------------------

if __name__ == "__main__":
    N_NODES = 64
    INPUT_DIM = 16
    HID_DIM = 32
    N_CLASSES = 8
    N_LAYERS = 2

    root = jax.random.PRNGKey(0)
    k_param, k_x, k_a = jax.random.split(root, 3)

    params = init_plain_gnn(k_param, INPUT_DIM, HID_DIM, N_CLASSES, N_LAYERS)

    X = jax.random.normal(k_x, (N_NODES, INPUT_DIM), jnp.float32)
    # Symmetric-normalized dense adjacency with self loops (typical GCN A).
    adj = (jax.random.uniform(k_a, (N_NODES, N_NODES)) < 0.1).astype(jnp.float32)
    adj = jnp.maximum(adj, adj.T) + jnp.eye(N_NODES, dtype=jnp.float32)
    deg_inv_sqrt = 1.0 / jnp.sqrt(adj.sum(axis=-1))
    A = deg_inv_sqrt[:, None] * adj * deg_inv_sqrt[None, :]

    out = plain_gnn_forward(params, X, A)
    out = jax.block_until_ready(out)

    ref = plain_gnn_reference(params, X, A)
    assert out.shape == (N_NODES, N_CLASSES)
    assert jnp.allclose(out, ref, atol=2e-4, rtol=2e-4), \
        float(jnp.max(jnp.abs(out - ref)))

    print("KERNEL_OK")
</pallas_src>

<mosaic_0001>
module attributes {stable_mosaic.version = 11 : i64} {
  func.func @_plain_gnn_kernel(%arg0: i32, %arg1: i32, %arg2: memref<128x128xf32, #tpu.memory_space<vmem>>, %arg3: memref<128x128xf32, #tpu.memory_space<vmem>>, %arg4: memref<1x128x128xf32, #tpu.memory_space<vmem>>, %arg5: memref<1x1x128xf32, #tpu.memory_space<vmem>>, %arg6: memref<128x128xf32, #tpu.memory_space<vmem>>, %arg7: memref<2x128x128xf32, #tpu.memory_space<vmem>>) attributes {dimension_semantics = [#tpu.dimension_semantics<arbitrary>, #tpu.dimension_semantics<arbitrary>], iteration_bounds = array<i64: 3, 1>, scalar_prefetch = 0 : i64, scratch_operands = 1 : i64, tpu.core_type = #tpu.core_type<tc>, window_params = [{transform_indices = @transform_0, window_bounds = array<i64: 128, 128>}, {pipeline_mode = #tpu.pipeline_mode<synchronous>, transform_indices = @transform_1, window_bounds = array<i64: 128, 128>}, {transform_indices = @transform_2, window_bounds = array<i64: 1, 128, 128>}, {transform_indices = @transform_3, window_bounds = array<i64: 1, 1, 128>}, {pipeline_mode = #tpu.pipeline_mode<synchronous>, transform_indices = @transform_4, window_bounds = array<i64: 128, 128>}]} {
    %c128_i32 = arith.constant 128 : i32
    %0 = arith.muli %arg1, %c128_i32 : i32
    %1 = tpu.assume_multiple %0, 128 : i32
    %c0_i32 = arith.constant 0 : i32
    %2 = arith.cmpi eq, %arg0, %c0_i32 : i32
    %c0_i32_0 = arith.constant 0 : i32
    %3 = arith.cmpi eq, %arg1, %c0_i32_0 : i32
    %4 = arith.andi %2, %3 : i1
    %5 = arith.extui %4 : i1 to i32
    %c0_i32_1 = arith.constant 0 : i32
    %6 = arith.cmpi ne, %5, %c0_i32_1 : i32
    scf.if %6 {
      %c0_10 = arith.constant 0 : index
      %c0_11 = arith.constant 0 : index
      %17 = vector.load %arg3[%c0_10, %c0_11] : memref<128x128xf32, #tpu.memory_space<vmem>>, vector<128x128xf32>
      %c1 = arith.constant 1 : index
      %c0_12 = arith.constant 0 : index
      %c0_13 = arith.constant 0 : index
      %18 = vector.load %arg7[%c1, %c0_12, %c0_13] : memref<2x128x128xf32, #tpu.memory_space<vmem>>, vector<1x128x128xf32>
      %19 = vector.shape_cast %18 : vector<1x128x128xf32> to vector<128x128xf32>
      %20 = vector.shape_cast %17 : vector<128x128xf32> to vector<1x128x128xf32>
      tpu.vector_store %arg7[%c1, %c0_12, %c0_13], %20 {strides = array<i32>} : memref<2x128x128xf32, #tpu.memory_space<vmem>>, vector<1x128x128xf32>,
    } else {
    }
    %c0 = arith.constant 0 : index
    %c0_2 = arith.constant 0 : index
    %c0_3 = arith.constant 0 : index
    %7 = vector.load %arg4[%c0, %c0_2, %c0_3] : memref<1x128x128xf32, #tpu.memory_space<vmem>>, vector<1x128x128xf32>
    %8 = vector.shape_cast %7 : vector<1x128x128xf32> to vector<128x128xf32>
    %c0_4 = arith.constant 0 : index
    %c0_5 = arith.constant 0 : index
    %c0_6 = arith.constant 0 : index
    %9 = vector.load %arg5[%c0_4, %c0_5, %c0_6] : memref<1x1x128xf32, #tpu.memory_space<vmem>>, vector<1x1x128xf32>
    %10 = vector.shape_cast %9 : vector<1x1x128xf32> to vector<1x128xf32>
    %c2_i32 = arith.constant 2 : i32
    %11 = arith.cmpi slt, %arg0, %c2_i32 : i32
    %12 = arith.extui %11 : i1 to i32
    %c0_i32_7 = arith.constant 0 : i32
    %13 = arith.cmpi ne, %12, %c0_i32_7 : i32
    scf.if %13 {
      %c1_i32 = arith.constant 1 : i32
      %17 = arith.addi %arg0, %c1_i32 : i32
      %c2_i32_10 = arith.constant 2 : i32
      %c0_i32_11 = arith.constant 0 : i32
      %18 = arith.cmpi eq, %c2_i32_10, %c0_i32_11 : i32
      %c1_i32_12 = arith.constant 1 : i32
      %19 = arith.select %18, %c1_i32_12, %c2_i32_10 : i32
      %20 = arith.remsi %17, %19 : i32
      %c0_i32_13 = arith.constant 0 : i32
      %21 = arith.cmpi ne, %20, %c0_i32_13 : i32
      %c0_i32_14 = arith.constant 0 : i32
      %22 = arith.cmpi slt, %20, %c0_i32_14 : i32
      %c0_i32_15 = arith.constant 0 : i32
      %23 = arith.cmpi slt, %19, %c0_i32_15 : i32
      %24 = arith.xori %22, %23 : i1
      %25 = arith.andi %24, %21 : i1
      %26 = arith.addi %20, %19 : i32
      %27 = arith.select %25, %26, %20 : i32
      %28 = arith.index_cast %27 : i32 to index
      %c0_16 = arith.constant 0 : index
      %c0_17 = arith.constant 0 : index
      %29 = vector.load %arg7[%28, %c0_16, %c0_17] : memref<2x128x128xf32, #tpu.memory_space<vmem>>, vector<1x128x128xf32>
      %30 = vector.shape_cast %29 : vector<1x128x128xf32> to vector<128x128xf32>
      %c0_18 = arith.constant 0 : index
      %c0_19 = arith.constant 0 : index
      %31 = vector.load %arg2[%c0_18, %c0_19] : memref<128x128xf32, #tpu.memory_space<vmem>>, vector<128x128xf32>
      %cst = arith.constant dense<0.000000e+00> : vector<128x128xf32>
      %32 = tpu.matmul %31, %30, %cst {dimension_numbers = #tpu.dot_dimension_numbers<[1], [0], [0], [1], [0, 0, 1, 1], [], []>} : vector<128x128xf32>, vector<128x128xf32>, vector<128x128xf32> -> vector<128x128xf32>
      %cst_20 = arith.constant dense<0.000000e+00> : vector<128x128xf32>
      %33 = tpu.matmul %32, %8, %cst_20 {dimension_numbers = #tpu.dot_dimension_numbers<[1], [0], [0], [1], [0, 0, 1, 1], [], []>} : vector<128x128xf32>, vector<128x128xf32>, vector<128x128xf32> -> vector<128x128xf32>
      %34 = vector.broadcast %10 : vector<1x128xf32> to vector<128x128xf32>
      %35 = arith.addf %33, %34 : vector<128x128xf32>
      %c1_i32_21 = arith.constant 1 : i32
      %36 = arith.cmpi slt, %arg0, %c1_i32_21 : i32
      %cst_22 = arith.constant 0.000000e+00 : f32
      %37 = vector.broadcast %cst_22 : f32 to vector<128x128xf32>
      %38 = arith.maximumf %35, %37 : vector<128x128xf32>
      %39 = arith.select %36, %38, %35 : vector<128x128xf32>
      %c2_i32_23 = arith.constant 2 : i32
      %c0_i32_24 = arith.constant 0 : i32
      %40 = arith.cmpi eq, %c2_i32_23, %c0_i32_24 : i32
      %c1_i32_25 = arith.constant 1 : i32
      %41 = arith.select %40, %c1_i32_25, %c2_i32_23 : i32
      %42 = arith.remsi %arg0, %41 : i32
      %c0_i32_26 = arith.constant 0 : i32
      %43 = arith.cmpi ne, %42, %c0_i32_26 : i32
      %c0_i32_27 = arith.constant 0 : i32
      %44 = arith.cmpi slt, %42, %c0_i32_27 : i32
      %c0_i32_28 = arith.constant 0 : i32
      %45 = arith.cmpi slt, %41, %c0_i32_28 : i32
      %46 = arith.xori %44, %45 : i1
      %47 = arith.andi %46, %43 : i1
      %48 = arith.addi %42, %41 : i32
      %49 = arith.select %47, %48, %42 : i32
      %50 = arith.index_cast %49 : i32 to index
      %51 = arith.index_cast %1 : i32 to index
      %c0_29 = arith.constant 0 : index
      %52 = vector.load %arg7[%50, %51, %c0_29] : memref<2x128x128xf32, #tpu.memory_space<vmem>>, vector<1x128x128xf32>
      %53 = vector.shape_cast %52 : vector<1x128x128xf32> to vector<128x128xf32>
      %54 = vector.shape_cast %39 : vector<128x128xf32> to vector<1x128x128xf32>
      tpu.vector_store %arg7[%50, %51, %c0_29], %54 {strides = array<i32>} : memref<2x128x128xf32, #tpu.memory_space<vmem>>, vector<1x128x128xf32>,
    } else {
    }
    %c2_i32_8 = arith.constant 2 : i32
    %14 = arith.cmpi eq, %arg0, %c2_i32_8 : i32
    %15 = arith.extui %14 : i1 to i32
    %c0_i32_9 = arith.constant 0 : i32
    %16 = arith.cmpi ne, %15, %c0_i32_9 : i32
    scf.if %16 {
      %c1_i32 = arith.constant 1 : i32
      %17 = arith.addi %arg0, %c1_i32 : i32
      %c2_i32_10 = arith.constant 2 : i32
      %c0_i32_11 = arith.constant 0 : i32
      %18 = arith.cmpi eq, %c2_i32_10, %c0_i32_11 : i32
      %c1_i32_12 = arith.constant 1 : i32
      %19 = arith.select %18, %c1_i32_12, %c2_i32_10 : i32
      %20 = arith.remsi %17, %19 : i32
      %c0_i32_13 = arith.constant 0 : i32
      %21 = arith.cmpi ne, %20, %c0_i32_13 : i32
      %c0_i32_14 = arith.constant 0 : i32
      %22 = arith.cmpi slt, %20, %c0_i32_14 : i32
      %c0_i32_15 = arith.constant 0 : i32
      %23 = arith.cmpi slt, %19, %c0_i32_15 : i32
      %24 = arith.xori %22, %23 : i1
      %25 = arith.andi %24, %21 : i1
      %26 = arith.addi %20, %19 : i32
      %27 = arith.select %25, %26, %20 : i32
      %28 = arith.index_cast %27 : i32 to index
      %29 = arith.index_cast %1 : i32 to index
      %c0_16 = arith.constant 0 : index
      %30 = vector.load %arg7[%28, %29, %c0_16] : memref<2x128x128xf32, #tpu.memory_space<vmem>>, vector<1x128x128xf32>
      %31 = vector.shape_cast %30 : vector<1x128x128xf32> to vector<128x128xf32>
      %cst = arith.constant dense<0.000000e+00> : vector<128x128xf32>
      %32 = tpu.matmul %31, %8, %cst {dimension_numbers = #tpu.dot_dimension_numbers<[1], [0], [0], [1], [0, 0, 1, 1], [], []>} : vector<128x128xf32>, vector<128x128xf32>, vector<128x128xf32> -> vector<128x128xf32>
      %33 = vector.broadcast %10 : vector<1x128xf32> to vector<128x128xf32>
      %34 = arith.addf %32, %33 : vector<128x128xf32>
      %35 = arith.index_cast %1 : i32 to index
      %c0_17 = arith.constant 0 : index
      %36 = vector.load %arg6[%35, %c0_17] : memref<128x128xf32, #tpu.memory_space<vmem>>, vector<128x128xf32>
      tpu.vector_store %arg6[%35, %c0_17], %34 {strides = array<i32>} : memref<128x128xf32, #tpu.memory_space<vmem>>, vector<128x128xf32>,
    } else {
    }
    return
  }
  func.func @transform_0(%arg0: i32, %arg1: i32) -> (i32, i32) {
    %c0_i32 = arith.constant 0 : i32
    %c0_i32_0 = arith.constant 0 : i32
    return %arg1, %c0_i32 : i32, i32
  }
  func.func @transform_1(%arg0: i32, %arg1: i32) -> (i32, i32) {
    %c0_i32 = arith.constant 0 : i32
    %c0_i32_0 = arith.constant 0 : i32
    %c0_i32_1 = arith.constant 0 : i32
    return %c0_i32, %c0_i32_0 : i32, i32
  }
  func.func @transform_2(%arg0: i32, %arg1: i32) -> (i32, i32, i32) {
    %c0_i32 = arith.constant 0 : i32
    %c0_i32_0 = arith.constant 0 : i32
    %c0_i32_1 = arith.constant 0 : i32
    return %arg0, %c0_i32, %c0_i32_0 : i32, i32, i32
  }
  func.func @transform_3(%arg0: i32, %arg1: i32) -> (i32, i32, i32) {
    %c0_i32 = arith.constant 0 : i32
    %c0_i32_0 = arith.constant 0 : i32
    %c0_i32_1 = arith.constant 0 : i32
    return %arg0, %c0_i32, %c0_i32_0 : i32, i32, i32
  }
  func.func @transform_4(%arg0: i32, %arg1: i32) -> (i32, i32) {
    %c0_i32 = arith.constant 0 : i32
    %c0_i32_0 = arith.constant 0 : i32
    %c0_i32_1 = arith.constant 0 : i32
    return %c0_i32, %c0_i32_0 : i32, i32
  }
}

</mosaic_0001>

<llo_original>
// kernel: tpu_custom_call.1
$region0: #{tpu_custom_call.1}
  #allocation0 [shape = 'u32[]', space=smem, size = 0x4, offset = 0x4, fixed_abs, tag = 'smem constant byte address 0x4 - core index']
  #allocation1 [shape = 'u32[144,128]{1,0:T(1,128)}', space=vmem, size = 0x12000, scoped, tag = 'internal scratch']
  #allocation2 [shape = 'f32[2,128,128]{2,1,0:T(8,128)}', space=vmem, size = 0x20000, scoped, tag = 'scratch operand']
  %s0 = inlined_call_operand.hbm [shape: f32[128,128], index: 0, kind: input, shape index: {}]
  %s1 = inlined_call_operand.hbm [shape: f32[128,128], index: 1, kind: input, shape index: {}]
  %s2 = inlined_call_operand.hbm [shape: f32[3,128,128], index: 2, kind: input, shape index: {}]
  %s3 = inlined_call_operand.vmem [shape: f32[3,1,128], index: 3, kind: input, shape index: {}]
  %s4 = inlined_call_operand.hbm [shape: f32[128,128], index: 4, kind: output, shape index: {}]
  %s5 = sld [smem:[#allocation0]]
  $region73: #{tpu_custom_call.1} parent=0
    _
  %s7 = ssub.s32 1, %s5
  %s8 = scalar_select 0, %s7, %s5
  $region1: #{tpu_custom_call.1} parent=0
    #allocation3 [shape = 'u8[65536]{0}', space=vmem, size = 0x10000, scoped, tag = 'input window, operand 0, single buffered']
    #allocation4 [shape = 's32[2]{0}', space=sflag, size = 0x8, scoped, tag = 'scoped memory for tpu_custom_call.1']
    #allocation5 [shape = 's32[2]{0}', space=sflag, size = 0x8, scoped, tag = 'scoped memory for tpu_custom_call.1']
    #allocation6 [shape = 'u8[65536]{0}', space=vmem, size = 0x10000, scoped, tag = 'input window, operand 1, single buffered']
    #allocation7 [shape = 's32[1]{0}', space=sflag, size = 0x4, scoped, tag = 'scoped memory for tpu_custom_call.1']
    #allocation8 [shape = 'u8[131072]{0}', space=vmem, size = 0x20000, scoped, tag = 'input window, operand 2']
    #allocation9 [shape = 'u8[65536]{0}', space=vmem, size = 0x10000, scoped, tag = 'output window, operand 0, single buffered']
    %9 = vsyncpa [#allocation4], 0
    %10 = vsyncpa [#allocation7], 0
    %11 = vsyncpa [#allocation5], 0
    loop: start=0, step=1, limit=5
    $region2: #{tpu_custom_call.1} parent=1 // loop_pre_header
      _
    $region3: #{tpu_custom_call.1} parent=1 // loop_header
      %s13 = sphi 0, %s17
      %p14 = scmp.ge.s32.totalorder %s13, 5
      %s20 = sphi 0, %s32
      %s21 = sphi 0, %s28
      %s22 = sphi 0, %s20
      %s23 = sphi 0, %s21
      %s24 = sphi 0, %s22
      %s25 = sphi 0, %s23
      %s35 = sphi 0, %s37
      %s38 = sphi 0, %s35
      %s39 = sphi 0, %s38
      %s55 = sphi 0, %s39
      %s59 = sphi 0, %s59
      %s61 = sphi 0, %s59
      %s62 = sphi 0, %s61
      %s76 = sphi 0, %s62
      %s82 = sphi 0, %s84
      %s85 = sphi 0, %s82
      %s86 = sphi 0, %s85
      %s102 = sphi 0, %s86
      %s108 = sphi 0, %s110
      %s111 = sphi 0, %s108
      %s112 = sphi 0, %s111
      %s128 = sphi 0, %s112
      %s132 = sphi 0, %s132
      %s134 = sphi 0, %s132
      %s135 = sphi 0, %s134
      %s149 = sphi 0, %s135
    $region4: #{tpu_custom_call.1} parent=1 // loop_header_branch
      %16 = sbr.rel (%p14) target = $region8
    $region5: #{tpu_custom_call.1} parent=1 // loop_body
      %s18 = ssub.s32 %s13, 1
      %s19 = ssub.s32 %s13, 2
      %s26 = sadd.s32 1, %s21
      %p27 = scmp.ge.s32.totalorder %s26, 1
      %s28 = scalar_select %p27, 0, %s26
      %s29 = sadd.s32 1, %s20
      %s30 = scalar_select %p27, %s29, %s20
      %p31 = scmp.ge.s32.totalorder %s30, 3
      %s32 = scalar_select %p31, 0, %s30
      %s33 = ssub.s32 %s21, %s28
      %p34 = scmp.eq.s32.totalorder %s33, 0
      %s36 = sadd.s32 %s35, 1
      %s37 = scalar_select %p34, %s35, %s36
      %p40 = pneg %p34
      %p41 = scmp.eq.s32.totalorder %s13, 2
      %p42 = por %p40, %p41
      %p43 = scmp.ne.s32.totalorder %s35, %s38
      %p44 = scmp.eq.s32.totalorder %s13, 0
      %p45 = por %p43, %p44
      %p46 = scmp.ne.s32.totalorder %s35, %s38
      %p47 = scmp.eq.s32.totalorder %s18, 2
      %p48 = por %p46, %p47
      %p49 = scmp.ne.s32.totalorder %s38, %s39
      %p50 = scmp.eq.s32.totalorder %s18, 0
      %p51 = por %p49, %p50
      %p52 = scmp.ne.s32.totalorder %s38, %s39
      %p53 = scmp.eq.s32.totalorder %s19, 2
      %p54 = por %p52, %p53
      %p56 = scmp.ne.s32.totalorder %s39, %s55
      %p57 = scmp.eq.s32.totalorder %s19, 0
      %p58 = por %p56, %p57
      %s60 = sadd.s32 %s59, 1
      %p63 = scmp.eq.s32.totalorder %s13, 2
      %p64 = scmp.ne.s32.totalorder %s59, %s61
      %p65 = scmp.eq.s32.totalorder %s13, 0
      %p66 = por %p64, %p65
      %p67 = scmp.ne.s32.totalorder %s59, %s61
      %p68 = scmp.eq.s32.totalorder %s18, 2
      %p69 = por %p67, %p68
      %p70 = scmp.ne.s32.totalorder %s61, %s62
      %p71 = scmp.eq.s32.totalorder %s18, 0
      %p72 = por %p70, %p71
      %p73 = scmp.ne.s32.totalorder %s61, %s62
      %p74 = scmp.eq.s32.totalorder %s19, 2
      %p75 = por %p73, %p74
      %p77 = scmp.ne.s32.totalorder %s62, %s76
      %p78 = scmp.eq.s32.totalorder %s19, 0
      %p79 = por %p77, %p78
      %s80 = ssub.s32 %s20, %s32
      %p81 = scmp.eq.s32.totalorder %s80, 0
      %s83 = sadd.s32 %s82, 1
      %s84 = scalar_select %p81, %s82, %s83
      %p87 = pneg %p81
      %p88 = scmp.eq.s32.totalorder %s13, 2
      %p89 = por %p87, %p88
      %p90 = scmp.ne.s32.totalorder %s82, %s85
      %p91 = scmp.eq.s32.totalorder %s13, 0
      %p92 = por %p90, %p91
      %p93 = scmp.ne.s32.totalorder %s82, %s85
      %p94 = scmp.eq.s32.totalorder %s18, 2
      %p95 = por %p93, %p94
      %p96 = scmp.ne.s32.totalorder %s85, %s86
      %p97 = scmp.eq.s32.totalorder %s18, 0
      %p98 = por %p96, %p97
      %p99 = scmp.ne.s32.totalorder %s85, %s86
      %p100 = scmp.eq.s32.totalorder %s19, 2
      %p101 = por %p99, %p100
      %p103 = scmp.ne.s32.totalorder %s86, %s102
      %p104 = scmp.eq.s32.totalorder %s19, 0
      %p105 = por %p103, %p104
      %s106 = ssub.s32 %s20, %s32
      %p107 = scmp.eq.s32.totalorder %s106, 0
      %s109 = sadd.s32 %s108, 1
      %s110 = scalar_select %p107, %s108, %s109
      %p113 = pneg %p107
      %p114 = scmp.eq.s32.totalorder %s13, 2
      %p115 = por %p113, %p114
      %p116 = scmp.ne.s32.totalorder %s108, %s111
      %p117 = scmp.eq.s32.totalorder %s13, 0
      %p118 = por %p116, %p117
      %p119 = scmp.ne.s32.totalorder %s108, %s111
      %p120 = scmp.eq.s32.totalorder %s18, 2
      %p121 = por %p119, %p120
      %p122 = scmp.ne.s32.totalorder %s111, %s112
      %p123 = scmp.eq.s32.totalorder %s18, 0
      %p124 = por %p122, %p123
      %p125 = scmp.ne.s32.totalorder %s111, %s112
      %p126 = scmp.eq.s32.totalorder %s19, 2
      %p127 = por %p125, %p126
      %p129 = scmp.ne.s32.totalorder %s112, %s128
      %p130 = scmp.eq.s32.totalorder %s19, 0
      %p131 = por %p129, %p130
      %s133 = sadd.s32 %s132, 1
      %p136 = scmp.eq.s32.totalorder %s13, 2
      %p137 = scmp.ne.s32.totalorder %s132, %s134
      %p138 = scmp.eq.s32.totalorder %s13, 0
      %p139 = por %p137, %p138
      %p140 = scmp.ne.s32.totalorder %s132, %s134
      %p141 = scmp.eq.s32.totalorder %s18, 2
      %p142 = por %p140, %p141
      %p143 = scmp.ne.s32.totalorder %s134, %s135
      %p144 = scmp.eq.s32.totalorder %s18, 0
      %p145 = por %p143, %p144
      %p146 = scmp.ne.s32.totalorder %s134, %s135
      %p147 = scmp.eq.s32.totalorder %s19, 2
      %p148 = por %p146, %p147
      %p150 = scmp.ne.s32.totalorder %s135, %s149
      %p151 = scmp.eq.s32.totalorder %s19, 0
      %p152 = por %p150, %p151
      %p153 = scmp.le.s32.totalorder 1, %s13
      %p154 = scmp.lt.s32.totalorder %s13, 4
      %p155 = pnand %p153, %p154
      %p156 = pneg %p155
      // Predicated region
      $region9: #{tpu_custom_call.1} parent=5 // pred_check
        _
      $region10: #{tpu_custom_call.1} parent=5 // pred_check_branch
        %158 = sbr.rel (%p155) target = $region12
      $region11: #{tpu_custom_call.1} parent=5 // pred_region
        %s159 = ssub.s32 %s13, 1
        // Predicated region
        $region13: #{tpu_custom_call.1} parent=11 // pred_check
          %p160 = pneg %p51
        $region14: #{tpu_custom_call.1} parent=11 // pred_check_branch
          %162 = sbr.rel (%p160) target = $region16
        $region15: #{tpu_custom_call.1} parent=11 // pred_region
          %s163 = smul.u32 16, %s23
          %s165 = ssub.s32 2048, 2048
          %166 = vsyncadd [#allocation4], %s165
          %s167 = smul.addr %s163, 128
          %s168 = scalar_lea.hbm %s0, %s167
          %s169 = sshll.u32 [#allocation3], 4
          %s170 = int_to_ptr.vmem [resolvable:$true] %s169
          %175 = dma.hbm_to_vmem [thread:$0]  %s168, 2048, %s170, [#allocation4], 128, 128, 8
        $region16: #{tpu_custom_call.1} parent=11 // pred_fallthru
          _
        // Predicated region
        $region17: #{tpu_custom_call.1} parent=11 // pred_check
          %p176 = pneg %p72
        $region18: #{tpu_custom_call.1} parent=11 // pred_check_branch
          %178 = sbr.rel (%p176) target = $region20
        $region19: #{tpu_custom_call.1} parent=11 // pred_region
          %s180 = ssub.s32 2048, 2048
          %181 = vsyncadd [#allocation7], %s180
          %s182 = sshll.u32 [#allocation6], 4
          %s183 = int_to_ptr.vmem [resolvable:$true] %s182
          %188 = dma.hbm_to_vmem [thread:$0]  %s1, 2048, %s183, [#allocation7], 128, 128, 8
        $region20: #{tpu_custom_call.1} parent=11 // pred_fallthru
          _
      $region12: #{tpu_custom_call.1} parent=5 // pred_fallthru
        _
      %p189 = scmp.lt.s32.totalorder %s13, 3
      // Predicated region
      $region21: #{tpu_custom_call.1} parent=5 // pred_check
        %p190 = pneg %p189
      $region22: #{tpu_custom_call.1} parent=5 // pred_check_branch
        %192 = sbr.rel (%p190) target = $region24
      $region23: #{tpu_custom_call.1} parent=5 // pred_region
        // Predicated region
        $region25: #{tpu_custom_call.1} parent=23 // pred_check
          %p193 = pneg %p92
        $region26: #{tpu_custom_call.1} parent=23 // pred_check_branch
          %195 = sbr.rel (%p193) target = $region28
        $region27: #{tpu_custom_call.1} parent=23 // pred_region
          %s196 = sand.u32 %s13, 1
          %s197 = scalar_lea.sflag [#allocation4], %s196
          %s198 = sand.u32 %s82, 1
          %s199 = smul.addr %s198, 128
          %s200 = scalar_lea.vmem [#allocation8], %s199
          %s202 = ssub.s32 2048, 2048
          %203 = vsyncadd %s197, %s202
          %s204 = smul.addr %s20, 16
          %s205 = smul.addr %s204, 128
          %s206 = scalar_lea.hbm %s2, %s205
          %s207 = sshll.u32 %s200, 4
          %s208 = int_to_ptr.vmem [resolvable:$true] %s207
          %213 = dma.hbm_to_vmem [thread:$0]  %s206, 2048, %s208, %s197, 128, 128, 8
        $region28: #{tpu_custom_call.1} parent=23 // pred_fallthru
          _
        // Predicated region
        $region29: #{tpu_custom_call.1} parent=23 // pred_check
          %p214 = pneg %p118
        $region30: #{tpu_custom_call.1} parent=23 // pred_check_branch
          %216 = sbr.rel (%p214) target = $region32
        $region31: #{tpu_custom_call.1} parent=23 // pred_region
          %p217 = scmp.lt.s32.totalorder %s20, 2
          %s218 = scalar_select %p217, %s20, 2
          %s219 = scalar_lea.vmem %s3, %s218
        $region32: #{tpu_custom_call.1} parent=23 // pred_fallthru
          _
      $region24: #{tpu_custom_call.1} parent=5 // pred_fallthru
        _
      %p220 = scmp.le.s32.totalorder 1, %s13
      %p221 = scmp.lt.s32.totalorder %s13, 4
      %p222 = pnand %p220, %p221
      %p223 = pneg %p222
      // Predicated region
      $region33: #{tpu_custom_call.1} parent=5 // pred_check
        _
      $region34: #{tpu_custom_call.1} parent=5 // pred_check_branch
        %225 = sbr.rel (%p222) target = $region36
      $region35: #{tpu_custom_call.1} parent=5 // pred_region
        %s226 = ssub.s32 %s13, 1
        // Predicated region
        $region37: #{tpu_custom_call.1} parent=35 // pred_check
          %p227 = pneg %p51
        $region38: #{tpu_custom_call.1} parent=35 // pred_check_branch
          %229 = sbr.rel (%p227) target = $region40
        $region39: #{tpu_custom_call.1} parent=35 // pred_region
          %230 = dma.done [#allocation4], 2048
        $region40: #{tpu_custom_call.1} parent=35 // pred_fallthru
          _
        // Predicated region
        $region41: #{tpu_custom_call.1} parent=35 // pred_check
          %p231 = pneg %p72
        $region42: #{tpu_custom_call.1} parent=35 // pred_check_branch
          %233 = sbr.rel (%p231) target = $region44
        $region43: #{tpu_custom_call.1} parent=35 // pred_region
          %234 = dma.done [#allocation7], 2048
        $region44: #{tpu_custom_call.1} parent=35 // pred_fallthru
          _
        %s235 = sand.u32 %s18, 1
        %s236 = scalar_lea.sflag [#allocation4], %s235
        %s237 = sand.u32 %s85, 1
        %s238 = smul.addr %s237, 128
        %s239 = scalar_lea.vmem [#allocation8], %s238
        // Predicated region
        $region45: #{tpu_custom_call.1} parent=35 // pred_check
          %p240 = pneg %p98
        $region46: #{tpu_custom_call.1} parent=35 // pred_check_branch
          %242 = sbr.rel (%p240) target = $region48
        $region47: #{tpu_custom_call.1} parent=35 // pred_region
          %243 = dma.done %s236, 2048
        $region48: #{tpu_custom_call.1} parent=35 // pred_fallthru
          _
        %p244 = pneg %p51
        %p245 = pneg %p48
        %p246 = pneg %p72
        %p247 = pneg %p69
        %s248 = sand.u32 %s18, 1
        %s249 = scalar_lea.sflag [#allocation4], %s248
        %s250 = sand.u32 %s85, 1
        %s251 = smul.addr %s250, 128
        %s252 = scalar_lea.vmem [#allocation8], %s251
        %p253 = pneg %p98
        %p254 = pneg %p95
        %p255 = scmp.lt.s32.totalorder %s22, 2
        %s256 = scalar_select %p255, %s22, 2
        %s257 = scalar_lea.vmem %s3, %s256
        %p258 = pneg %p124
        %p259 = pneg %p121
        %p260 = pneg %p145
        %p261 = pneg %p142
        %s262 = smul.u32 16, %s23
        %p263 = scmp.lt.s32.totalorder %s22, 2
        %s264 = scalar_select %p263, %s22, 2
        %s265 = scalar_lea.vmem %s3, %s264
        %s266 = smul.u32 %s23, 128
        %p267 = scmp.eq.s32.totalorder %s22, 0
        %p268 = scmp.eq.s32.totalorder %s23, 0
        %p269 = pnand %p267, %p268
        %p270 = pneg %p269
        // Predicated region
        $region49: #{tpu_custom_call.1} parent=35 // pred_check
          _
        $region50: #{tpu_custom_call.1} parent=35 // pred_check_branch
          %272 = sbr.rel (%p269) target = $region52
        $region51: #{tpu_custom_call.1} parent=35 // pred_region
          %v273 = vld [vmem:[#allocation6] sm:$0xff]
          %v274 = vld [vmem:[#allocation6 + $0x8] sm:$0xff]
          %v275 = vld [vmem:[#allocation6 + $0x10] sm:$0xff]
          %v276 = vld [vmem:[#allocation6 + $0x18] sm:$0xff]
          %v277 = vld [vmem:[#allocation6 + $0x20] sm:$0xff]
          %v278 = vld [vmem:[#allocation6 + $0x28] sm:$0xff]
          %v279 = vld [vmem:[#allocation6 + $0x30] sm:$0xff]
          %v280 = vld [vmem:[#allocation6 + $0x38] sm:$0xff]
          %v281 = vld [vmem:[#allocation6 + $0x40] sm:$0xff]
          %v282 = vld [vmem:[#allocation6 + $0x48] sm:$0xff]
          %v283 = vld [vmem:[#allocation6 + $0x50] sm:$0xff]
          %v284 = vld [vmem:[#allocation6 + $0x58] sm:$0xff]
          %v285 = vld [vmem:[#allocation6 + $0x60] sm:$0xff]
          %v286 = vld [vmem:[#allocation6 + $0x68] sm:$0xff]
          %v287 = vld [vmem:[#allocation6 + $0x70] sm:$0xff]
          %v288 = vld [vmem:[#allocation6 + $0x78] sm:$0xff]
          %s289 = scalar_lea.vmem [#allocation2], 128
          %290 = vst [vmem:[%s289] sm:$0xff] %v273
          %291 = vst [vmem:[%s289 + $0x8] sm:$0xff] %v274
          %292 = vst [vmem:[%s289 + $0x10] sm:$0xff] %v275
          %293 = vst [vmem:[%s289 + $0x18] sm:$0xff] %v276
          %294 = vst [vmem:[%s289 + $0x20] sm:$0xff] %v277
          %295 = vst [vmem:[%s289 + $0x28] sm:$0xff] %v278
          %296 = vst [vmem:[%s289 + $0x30] sm:$0xff] %v279
          %297 = vst [vmem:[%s289 + $0x38] sm:$0xff] %v280
          %298 = vst [vmem:[%s289 + $0x40] sm:$0xff] %v281
          %299 = vst [vmem:[%s289 + $0x48] sm:$0xff] %v282
          %300 = vst [vmem:[%s289 + $0x50] sm:$0xff] %v283
          %301 = vst [vmem:[%s289 + $0x58] sm:$0xff] %v284
          %302 = vst [vmem:[%s289 + $0x60] sm:$0xff] %v285
          %303 = vst [vmem:[%s289 + $0x68] sm:$0xff] %v286
          %304 = vst [vmem:[%s289 + $0x70] sm:$0xff] %v287
          %305 = vst [vmem:[%s289 + $0x78] sm:$0xff] %v288
        $region52: #{tpu_custom_call.1} parent=35 // pred_fallthru
          _
        %v306 = vld [vmem:[%s239] sm:$0xff]
        %v307 = vld [vmem:[%s239 + $0x8] sm:$0xff]
        %v308 = vld [vmem:[%s239 + $0x10] sm:$0xff]
        %v309 = vld [vmem:[%s239 + $0x18] sm:$0xff]
        %v310 = vld [vmem:[%s239 + $0x20] sm:$0xff]
        %v311 = vld [vmem:[%s239 + $0x28] sm:$0xff]
        %v312 = vld [vmem:[%s239 + $0x30] sm:$0xff]
        %v313 = vld [vmem:[%s239 + $0x38] sm:$0xff]
        %v314 = vld [vmem:[%s239 + $0x40] sm:$0xff]
        %v315 = vld [vmem:[%s239 + $0x48] sm:$0xff]
        %v316 = vld [vmem:[%s239 + $0x50] sm:$0xff]
        %v317 = vld [vmem:[%s239 + $0x58] sm:$0xff]
        %v318 = vld [vmem:[%s239 + $0x60] sm:$0xff]
        %v319 = vld [vmem:[%s239 + $0x68] sm:$0xff]
        %v320 = vld [vmem:[%s239 + $0x70] sm:$0xff]
        %v321 = vld [vmem:[%s239 + $0x78] sm:$0xff]
        %v322 = vld [vmem:[%s265] sm:$0x1]
        %p323 = scmp.lt.s32.totalorder %s22, 2
        // Predicated region
        $region53: #{tpu_custom_call.1} parent=35 // pred_check
          %p324 = pneg %p323
        $region54: #{tpu_custom_call.1} parent=35 // pred_check_branch
          %326 = sbr.rel (%p324) target = $region56
        $region55: #{tpu_custom_call.1} parent=35 // pred_region
          %s327 = sadd.s32 %s22, 1
          %p328 = scmp.lt.s32.totalorder %s327, 0
          %s329 = ssub.s32 0, %s327
          %s330 = scalar_select %p328, %s329, %s327
          %s331 = sand.u32 %s330, 1
          %s332 = ssub.s32 0, %s331
          %s333 = scalar_select %p328, %s332, %s331
          %p334 = scmp.ne.s32.totalorder %s333, 0
          %p335 = scmp.lt.s32.totalorder %s333, 0
          %p336 = pnand %p335, %p334
          %p337 = pneg %p336
          %s338 = sadd.s32 %s333, 2
          %s339 = scalar_select %p337, %s338, %s333
          %s340 = smul.u32 %s339, 128
          %s341 = scalar_lea.vmem [#allocation2], %s340
          %v342 = vld [vmem:[%s341] sm:$0xff]
          %v343 = vld [vmem:[%s341 + $0x8] sm:$0xff]
          %v344 = vld [vmem:[%s341 + $0x10] sm:$0xff]
          %v345 = vld [vmem:[%s341 + $0x18] sm:$0xff]
          %v346 = vld [vmem:[%s341 + $0x20] sm:$0xff]
          %v347 = vld [vmem:[%s341 + $0x28] sm:$0xff]
          %v348 = vld [vmem:[%s341 + $0x30] sm:$0xff]
          %v349 = vld [vmem:[%s341 + $0x38] sm:$0xff]
          %v350 = vld [vmem:[%s341 + $0x40] sm:$0xff]
          %v351 = vld [vmem:[%s341 + $0x48] sm:$0xff]
          %v352 = vld [vmem:[%s341 + $0x50] sm:$0xff]
          %v353 = vld [vmem:[%s341 + $0x58] sm:$0xff]
          %v354 = vld [vmem:[%s341 + $0x60] sm:$0xff]
          %v355 = vld [vmem:[%s341 + $0x68] sm:$0xff]
          %v356 = vld [vmem:[%s341 + $0x70] sm:$0xff]
          %v357 = vld [vmem:[%s341 + $0x78] sm:$0xff]
          %v358 = vld [vmem:[#allocation3] sm:$0xff]
          %v359 = vld [vmem:[#allocation3 + $0x8] sm:$0xff]
          %v360 = vld [vmem:[#allocation3 + $0x10] sm:$0xff]
          %v361 = vld [vmem:[#allocation3 + $0x18] sm:$0xff]
          %v362 = vld [vmem:[#allocation3 + $0x20] sm:$0xff]
          %v363 = vld [vmem:[#allocation3 + $0x28] sm:$0xff]
          %v364 = vld [vmem:[#allocation3 + $0x30] sm:$0xff]
          %v365 = vld [vmem:[#allocation3 + $0x38] sm:$0xff]
          %v366 = vld [vmem:[#allocation3 + $0x40] sm:$0xff]
          %v367 = vld [vmem:[#allocation3 + $0x48] sm:$0xff]
          %v368 = vld [vmem:[#allocation3 + $0x50] sm:$0xff]
          %v369 = vld [vmem:[#allocation3 + $0x58] sm:$0xff]
          %v370 = vld [vmem:[#allocation3 + $0x60] sm:$0xff]
          %v371 = vld [vmem:[#allocation3 + $0x68] sm:$0xff]
          %v372 = vld [vmem:[#allocation3 + $0x70] sm:$0xff]
          %v373 = vld [vmem:[#allocation3 + $0x78] sm:$0xff]
          %374 = vmatprep.subr.mxu0 0.0
          %375 = vmatpush1.msra.mxu0 %v357
          %376 = vmatprep.subr.mxu0 0.0
          %377 = vmatpush1.msra.mxu0 %v356
          %378 = vmatprep.subr.mxu0 0.0
          %379 = vmatpush1.msra.mxu0 %v355
          %380 = vmatprep.subr.mxu0 0.0
          %381 = vmatpush1.msra.mxu0 %v354
          %382 = vmatprep.subr.mxu0 0.0
          %383 = vmatpush1.msra.mxu0 %v353
          %384 = vmatprep.subr.mxu0 0.0
          %385 = vmatpush1.msra.mxu0 %v352
          %386 = vmatprep.subr.mxu0 0.0
          %387 = vmatpush1.msra.mxu0 %v351
          %388 = vmatprep.subr.mxu0 0.0
          %389 = vmatpush1.msra.mxu0 %v350
          %390 = vmatprep.subr.mxu0 0.0
          %391 = vmatpush1.msra.mxu0 %v349
          %392 = vmatprep.subr.mxu0 0.0
          %393 = vmatpush1.msra.mxu0 %v348
          %394 = vmatprep.subr.mxu0 0.0
          %395 = vmatpush1.msra.mxu0 %v347
          %396 = vmatprep.subr.mxu0 0.0
          %397 = vmatpush1.msra.mxu0 %v346
          %398 = vmatprep.subr.mxu0 0.0
          %399 = vmatpush1.msra.mxu0 %v345
          %400 = vmatprep.subr.mxu0 0.0
          %401 = vmatpush1.msra.mxu0 %v344
          %402 = vmatprep.subr.mxu0 0.0
          %403 = vmatpush1.msra.mxu0 %v343
          %404 = vmatprep.subr.mxu0 0.0
          %405 = vmatpush1.msra.mxu0 %v342
          %406 = vmatprep.subr.mxu0 0.0
          %407 = vmatpush2.msra.mxu0 0.0
          %408 = vmatprep.subr.mxu0 0.0
          %409 = vmatpush2.msra.mxu0 0.0
          %410 = vmatprep.subr.mxu0 0.0
          %411 = vmatpush2.msra.mxu0 0.0
          %412 = vmatprep.subr.mxu0 0.0
          %413 = vmatpush2.msra.mxu0 0.0
          %414 = vmatprep.subr.mxu0 0.0
          %415 = vmatpush2.msra.mxu0 0.0
          %416 = vmatprep.subr.mxu0 0.0
          %417 = vmatpush2.msra.mxu0 0.0
          %418 = vmatprep.subr.mxu0 0.0
          %419 = vmatpush2.msra.mxu0 0.0
          %420 = vmatprep.subr.mxu0 0.0
          %421 = vmatpush2.msra.mxu0 0.0
          %422 = vmatprep.subr.mxu0 0.0
          %423 = vmatpush2.msra.mxu0 0.0
          %424 = vmatprep.subr.mxu0 0.0
          %425 = vmatpush2.msra.mxu0 0.0
          %426 = vmatprep.subr.mxu0 0.0
          %427 = vmatpush2.msra.mxu0 0.0
          %428 = vmatprep.subr.mxu0 0.0
          %429 = vmatpush2.msra.mxu0 0.0
          %430 = vmatprep.subr.mxu0 0.0
          %431 = vmatpush2.msra.mxu0 0.0
          %432 = vmatprep.subr.mxu0 0.0
          %433 = vmatpush2.msra.mxu0 0.0
          %434 = vmatprep.subr.mxu0 0.0
          %435 = vmatpush2.msra.mxu0 0.0
          %436 = vmatprep.subr.mxu0 0.0
          %437 = vmatpush2.msra.mxu0 0.0
          %438 = vmatprep.mubr.f32.mxu0 0.0
          %439 = vmatmul.mubr.f32.gmra.mxu0 %v358
          %v440 = vpop.f32.mrf.mxu0
          %v441 = vadd.f32 0.0, %v440
          %v442 = vpop.f32.mrf.mxu0
          %443 = vmatprep.mubr.f32.mxu0 0.0
          %444 = vmatmul.mubr.f32.gmra.mxu0 %v359
          %v445 = vpop.f32.mrf.mxu0
          %v446 = vadd.f32 0.0, %v445
          %v447 = vpop.f32.mrf.mxu0
          %448 = vmatprep.mubr.f32.mxu0 0.0
          %449 = vmatmul.mubr.f32.gmra.mxu0 %v360
          %v450 = vpop.f32.mrf.mxu0
          %v451 = vadd.f32 0.0, %v450
          %v452 = vpop.f32.mrf.mxu0
          %453 = vmatprep.mubr.f32.mxu0 0.0
          %454 = vmatmul.mubr.f32.gmra.mxu0 %v361
          %v455 = vpop.f32.mrf.mxu0
          %v456 = vadd.f32 0.0, %v455
          %v457 = vpop.f32.mrf.mxu0
          %458 = vmatprep.mubr.f32.mxu0 0.0
          %459 = vmatmul.mubr.f32.gmra.mxu0 %v362
          %v460 = vpop.f32.mrf.mxu0
          %v461 = vadd.f32 0.0, %v460
          %v462 = vpop.f32.mrf.mxu0
          %463 = vmatprep.mubr.f32.mxu0 0.0
          %464 = vmatmul.mubr.f32.gmra.mxu0 %v363
          %v465 = vpop.f32.mrf.mxu0
          %v466 = vadd.f32 0.0, %v465
          %v467 = vpop.f32.mrf.mxu0
          %468 = vmatprep.mubr.f32.mxu0 0.0
          %469 = vmatmul.mubr.f32.gmra.mxu0 %v364
          %v470 = vpop.f32.mrf.mxu0
          %v471 = vadd.f32 0.0, %v470
          %v472 = vpop.f32.mrf.mxu0
          %473 = vmatprep.mubr.f32.mxu0 0.0
          %474 = vmatmul.mubr.f32.gmra.mxu0 %v365
          %v475 = vpop.f32.mrf.mxu0
          %v476 = vadd.f32 0.0, %v475
          %v477 = vpop.f32.mrf.mxu0
          %478 = vmatprep.mubr.f32.mxu0 0.0
          %479 = vmatmul.mubr.f32.gmra.mxu0 %v366
          %v480 = vpop.f32.mrf.mxu0
          %v481 = vadd.f32 0.0, %v480
          %v482 = vpop.f32.mrf.mxu0
          %483 = vmatprep.mubr.f32.mxu0 0.0
          %484 = vmatmul.mubr.f32.gmra.mxu0 %v367
          %v485 = vpop.f32.mrf.mxu0
          %v486 = vadd.f32 0.0, %v485
          %v487 = vpop.f32.mrf.mxu0
          %488 = vmatprep.mubr.f32.mxu0 0.0
          %489 = vmatmul.mubr.f32.gmra.mxu0 %v368
          %v490 = vpop.f32.mrf.mxu0
          %v491 = vadd.f32 0.0, %v490
          %v492 = vpop.f32.mrf.mxu0
          %493 = vmatprep.mubr.f32.mxu0 0.0
          %494 = vmatmul.mubr.f32.gmra.mxu0 %v369
          %v495 = vpop.f32.mrf.mxu0
          %v496 = vadd.f32 0.0, %v495
          %v497 = vpop.f32.mrf.mxu0
          %498 = vmatprep.mubr.f32.mxu0 0.0
          %499 = vmatmul.mubr.f32.gmra.mxu0 %v370
          %v500 = vpop.f32.mrf.mxu0
          %v501 = vadd.f32 0.0, %v500
          %v502 = vpop.f32.mrf.mxu0
          %503 = vmatprep.mubr.f32.mxu0 0.0
          %504 = vmatmul.mubr.f32.gmra.mxu0 %v371
          %v505 = vpop.f32.mrf.mxu0
          %v506 = vadd.f32 0.0, %v505
          %v507 = vpop.f32.mrf.mxu0
          %508 = vmatprep.mubr.f32.mxu0 0.0
          %509 = vmatmul.mubr.f32.gmra.mxu0 %v372
          %v510 = vpop.f32.mrf.mxu0
          %v511 = vadd.f32 0.0, %v510
          %v512 = vpop.f32.mrf.mxu0
          %513 = vmatprep.mubr.f32.mxu0 0.0
          %514 = vmatmul.mubr.f32.gmra.mxu0 %v373
          %v515 = vpop.f32.mrf.mxu0
          %v516 = vadd.f32 0.0, %v515
          %v517 = vpop.f32.mrf.mxu0
          %518 = vdwg.mxu0
          %v520 = vlaneseq
          %v521 = vshrl.u32 %v520, 7
          %v522 = vsub.s32 0, %v521
          %v523 = vrot.slane %v322, %v522
          %525 = vmatprep.subr.mxu0 0.0
          %526 = vmatpush1.msra.mxu0 %v321
          %527 = vmatprep.subr.mxu0 0.0
          %528 = vmatpush1.msra.mxu0 %v320
          %529 = vmatprep.subr.mxu0 0.0
          %530 = vmatpush1.msra.mxu0 %v319
          %531 = vmatprep.subr.mxu0 0.0
          %532 = vmatpush1.msra.mxu0 %v318
          %533 = vmatprep.subr.mxu0 0.0
          %534 = vmatpush1.msra.mxu0 %v317
          %535 = vmatprep.subr.mxu0 0.0
          %536 = vmatpush1.msra.mxu0 %v316
          %537 = vmatprep.subr.mxu0 0.0
          %538 = vmatpush1.msra.mxu0 %v315
          %539 = vmatprep.subr.mxu0 0.0
          %540 = vmatpush1.msra.mxu0 %v314
          %541 = vmatprep.subr.mxu0 0.0
          %542 = vmatpush1.msra.mxu0 %v313
          %543 = vmatprep.subr.mxu0 0.0
          %544 = vmatpush1.msra.mxu0 %v312
          %545 = vmatprep.subr.mxu0 0.0
          %546 = vmatpush1.msra.mxu0 %v311
          %547 = vmatprep.subr.mxu0 0.0
          %548 = vmatpush1.msra.mxu0 %v310
          %549 = vmatprep.subr.mxu0 0.0
          %550 = vmatpush1.msra.mxu0 %v309
          %551 = vmatprep.subr.mxu0 0.0
          %552 = vmatpush1.msra.mxu0 %v308
          %553 = vmatprep.subr.mxu0 0.0
          %554 = vmatpush1.msra.mxu0 %v307
          %555 = vmatprep.subr.mxu0 0.0
          %556 = vmatpush1.msra.mxu0 %v306
          %557 = vmatprep.subr.mxu0 0.0
          %558 = vmatpush2.msra.mxu0 0.0
          %559 = vmatprep.subr.mxu0 0.0
          %560 = vmatpush2.msra.mxu0 0.0
          %561 = vmatprep.subr.mxu0 0.0
          %562 = vmatpush2.msra.mxu0 0.0
          %563 = vmatprep.subr.mxu0 0.0
          %564 = vmatpush2.msra.mxu0 0.0
          %565 = vmatprep.subr.mxu0 0.0
          %566 = vmatpush2.msra.mxu0 0.0
          %567 = vmatprep.subr.mxu0 0.0
          %568 = vmatpush2.msra.mxu0 0.0
          %569 = vmatprep.subr.mxu0 0.0
          %570 = vmatpush2.msra.mxu0 0.0
          %571 = vmatprep.subr.mxu0 0.0
          %572 = vmatpush2.msra.mxu0 0.0
          %573 = vmatprep.subr.mxu0 0.0
          %574 = vmatpush2.msra.mxu0 0.0
          %575 = vmatprep.subr.mxu0 0.0
          %576 = vmatpush2.msra.mxu0 0.0
          %577 = vmatprep.subr.mxu0 0.0
          %578 = vmatpush2.msra.mxu0 0.0
          %579 = vmatprep.subr.mxu0 0.0
          %580 = vmatpush2.msra.mxu0 0.0
          %581 = vmatprep.subr.mxu0 0.0
          %582 = vmatpush2.msra.mxu0 0.0
          %583 = vmatprep.subr.mxu0 0.0
          %584 = vmatpush2.msra.mxu0 0.0
          %585 = vmatprep.subr.mxu0 0.0
          %586 = vmatpush2.msra.mxu0 0.0
          %587 = vmatprep.subr.mxu0 0.0
          %588 = vmatpush2.msra.mxu0 0.0
          %589 = vmatprep.mubr.f32.mxu0 0.0
          %590 = vmatmul.mubr.f32.gmra.mxu0 %v441
          %v591 = vpop.f32.mrf.mxu0
          %v592 = vadd.f32 %v523, %v591
          %v593 = vpop.f32.mrf.mxu0
          %594 = vmatprep.mubr.f32.mxu0 0.0
          %595 = vmatmul.mubr.f32.gmra.mxu0 %v446
          %v596 = vpop.f32.mrf.mxu0
          %v597 = vadd.f32 %v523, %v596
          %v598 = vpop.f32.mrf.mxu0
          %599 = vmatprep.mubr.f32.mxu0 0.0
          %600 = vmatmul.mubr.f32.gmra.mxu0 %v451
          %v601 = vpop.f32.mrf.mxu0
          %v602 = vadd.f32 %v523, %v601
          %v603 = vpop.f32.mrf.mxu0
          %604 = vmatprep.mubr.f32.mxu0 0.0
          %605 = vmatmul.mubr.f32.gmra.mxu0 %v456
          %v606 = vpop.f32.mrf.mxu0
          %v607 = vadd.f32 %v523, %v606
          %v608 = vpop.f32.mrf.mxu0
          %609 = vmatprep.mubr.f32.mxu0 0.0
          %610 = vmatmul.mubr.f32.gmra.mxu0 %v461
          %v611 = vpop.f32.mrf.mxu0
          %v612 = vadd.f32 %v523, %v611
          %v613 = vpop.f32.mrf.mxu0
          %614 = vmatprep.mubr.f32.mxu0 0.0
          %615 = vmatmul.mubr.f32.gmra.mxu0 %v466
          %v616 = vpop.f32.mrf.mxu0
          %v617 = vadd.f32 %v523, %v616
          %v618 = vpop.f32.mrf.mxu0
          %619 = vmatprep.mubr.f32.mxu0 0.0
          %620 = vmatmul.mubr.f32.gmra.mxu0 %v471
          %v621 = vpop.f32.mrf.mxu0
          %v622 = vadd.f32 %v523, %v621
          %v623 = vpop.f32.mrf.mxu0
          %624 = vmatprep.mubr.f32.mxu0 0.0
          %625 = vmatmul.mubr.f32.gmra.mxu0 %v476
          %v626 = vpop.f32.mrf.mxu0
          %v627 = vadd.f32 %v523, %v626
          %v628 = vpop.f32.mrf.mxu0
          %629 = vmatprep.mubr.f32.mxu0 0.0
          %630 = vmatmul.mubr.f32.gmra.mxu0 %v481
          %v631 = vpop.f32.mrf.mxu0
          %v632 = vadd.f32 %v523, %v631
          %v633 = vpop.f32.mrf.mxu0
          %634 = vmatprep.mubr.f32.mxu0 0.0
          %635 = vmatmul.mubr.f32.gmra.mxu0 %v486
          %v636 = vpop.f32.mrf.mxu0
          %v637 = vadd.f32 %v523, %v636
          %v638 = vpop.f32.mrf.mxu0
          %639 = vmatprep.mubr.f32.mxu0 0.0
          %640 = vmatmul.mubr.f32.gmra.mxu0 %v491
          %v641 = vpop.f32.mrf.mxu0
          %v642 = vadd.f32 %v523, %v641
          %v643 = vpop.f32.mrf.mxu0
          %644 = vmatprep.mubr.f32.mxu0 0.0
          %645 = vmatmul.mubr.f32.gmra.mxu0 %v496
          %v646 = vpop.f32.mrf.mxu0
          %v647 = vadd.f32 %v523, %v646
          %v648 = vpop.f32.mrf.mxu0
          %649 = vmatprep.mubr.f32.mxu0 0.0
          %650 = vmatmul.mubr.f32.gmra.mxu0 %v501
          %v651 = vpop.f32.mrf.mxu0
          %v652 = vadd.f32 %v523, %v651
          %v653 = vpop.f32.mrf.mxu0
          %654 = vmatprep.mubr.f32.mxu0 0.0
          %655 = vmatmul.mubr.f32.gmra.mxu0 %v506
          %v656 = vpop.f32.mrf.mxu0
          %v657 = vadd.f32 %v523, %v656
          %v658 = vpop.f32.mrf.mxu0
          %659 = vmatprep.mubr.f32.mxu0 0.0
          %660 = vmatmul.mubr.f32.gmra.mxu0 %v511
          %v661 = vpop.f32.mrf.mxu0
          %v662 = vadd.f32 %v523, %v661
          %v663 = vpop.f32.mrf.mxu0
          %664 = vmatprep.mubr.f32.mxu0 0.0
          %665 = vmatmul.mubr.f32.gmra.mxu0 %v516
          %v666 = vpop.f32.mrf.mxu0
          %v667 = vadd.f32 %v523, %v666
          %v668 = vpop.f32.mrf.mxu0
          %669 = vdwg.mxu0
          %p670 = scmp.lt.s32.totalorder %s22, 1
          %v671 = vmax.f32 %v592, 0.0
          %v672 = vmax.f32 %v597, 0.0
          %v673 = vmax.f32 %v602, 0.0
          %v674 = vmax.f32 %v607, 0.0
          %v675 = vmax.f32 %v612, 0.0
          %v676 = vmax.f32 %v617, 0.0
          %v677 = vmax.f32 %v622, 0.0
          %v678 = vmax.f32 %v627, 0.0
          %v679 = vmax.f32 %v632, 0.0
          %v680 = vmax.f32 %v637, 0.0
          %v681 = vmax.f32 %v642, 0.0
          %v682 = vmax.f32 %v647, 0.0
          %v683 = vmax.f32 %v652, 0.0
          %v684 = vmax.f32 %v657, 0.0
          %v685 = vmax.f32 %v662, 0.0
          %v686 = vmax.f32 %v667, 0.0
          %s687 = scalar_select %p670, 1, 0
          %v688 = vstv %s687
          %vm689 = vcmp.eq.s32.totalorder %v688, 1
          %v690 = vsel %vm689, %v671, %v592
          %v691 = vsel %vm689, %v672, %v597
          %v692 = vsel %vm689, %v673, %v602
          %v693 = vsel %vm689, %v674, %v607
          %v694 = vsel %vm689, %v675, %v612
          %v695 = vsel %vm689, %v676, %v617
          %v696 = vsel %vm689, %v677, %v622
          %v697 = vsel %vm689, %v678, %v627
          %v698 = vsel %vm689, %v679, %v632
          %v699 = vsel %vm689, %v680, %v637
          %v700 = vsel %vm689, %v681, %v642
          %v701 = vsel %vm689, %v682, %v647
          %v702 = vsel %vm689, %v683, %v652
          %v703 = vsel %vm689, %v684, %v657
          %v704 = vsel %vm689, %v685, %v662
          %v705 = vsel %vm689, %v686, %v667
          %p706 = scmp.lt.s32.totalorder %s22, 0
          %s707 = ssub.s32 0, %s22
          %s708 = scalar_select %p706, %s707, %s22
          %s709 = sand.u32 %s708, 1
          %s710 = ssub.s32 0, %s709
          %s711 = scalar_select %p706, %s710, %s709
          %p712 = scmp.ne.s32.totalorder %s711, 0
          %p713 = scmp.lt.s32.totalorder %s711, 0
          %p714 = pnand %p713, %p712
          %p715 = pneg %p714
          %s716 = sadd.s32 %s711, 2
          %s717 = scalar_select %p715, %s716, %s711
          %s718 = smul.u32 %s717, 128
          %s719 = sadd.s32 %s266, %s718
          %s720 = scalar_lea.vmem [#allocation2], %s719
          %721 = vst [vmem:[%s720] sm:$0xff] %v690
          %722 = vst [vmem:[%s720 + $0x8] sm:$0xff] %v691
          %723 = vst [vmem:[%s720 + $0x10] sm:$0xff] %v692
          %724 = vst [vmem:[%s720 + $0x18] sm:$0xff] %v693
          %725 = vst [vmem:[%s720 + $0x20] sm:$0xff] %v694
          %726 = vst [vmem:[%s720 + $0x28] sm:$0xff] %v695
          %727 = vst [vmem:[%s720 + $0x30] sm:$0xff] %v696
          %728 = vst [vmem:[%s720 + $0x38] sm:$0xff] %v697
          %729 = vst [vmem:[%s720 + $0x40] sm:$0xff] %v698
          %730 = vst [vmem:[%s720 + $0x48] sm:$0xff] %v699
          %731 = vst [vmem:[%s720 + $0x50] sm:$0xff] %v700
          %732 = vst [vmem:[%s720 + $0x58] sm:$0xff] %v701
          %733 = vst [vmem:[%s720 + $0x60] sm:$0xff] %v702
          %734 = vst [vmem:[%s720 + $0x68] sm:$0xff] %v703
          %735 = vst [vmem:[%s720 + $0x70] sm:$0xff] %v704
          %736 = vst [vmem:[%s720 + $0x78] sm:$0xff] %v705
        $region56: #{tpu_custom_call.1} parent=35 // pred_fallthru
          _
        %p737 = scmp.eq.s32.totalorder %s22, 2
        // Predicated region
        $region57: #{tpu_custom_call.1} parent=35 // pred_check
          %p738 = pneg %p737
        $region58: #{tpu_custom_call.1} parent=35 // pred_check_branch
          %740 = sbr.rel (%p738) target = $region60
        $region59: #{tpu_custom_call.1} parent=35 // pred_region
          %s741 = sadd.s32 %s22, 1
          %p742 = scmp.lt.s32.totalorder %s741, 0
          %s743 = ssub.s32 0, %s741
          %s744 = scalar_select %p742, %s743, %s741
          %s745 = sand.u32 %s744, 1
          %s746 = ssub.s32 0, %s745
          %s747 = scalar_select %p742, %s746, %s745
          %p748 = scmp.ne.s32.totalorder %s747, 0
          %p749 = scmp.lt.s32.totalorder %s747, 0
          %p750 = pnand %p749, %p748
          %p751 = pneg %p750
          %s752 = sadd.s32 %s747, 2
          %s753 = scalar_select %p751, %s752, %s747
          %s754 = smul.u32 %s753, 128
          %s755 = sadd.s32 %s266, %s754
          %s756 = scalar_lea.vmem [#allocation2], %s755
          %v757 = vld [vmem:[%s756] sm:$0xff]
          %v758 = vld [vmem:[%s756 + $0x8] sm:$0xff]
          %v759 = vld [vmem:[%s756 + $0x10] sm:$0xff]
          %v760 = vld [vmem:[%s756 + $0x18] sm:$0xff]
          %v761 = vld [vmem:[%s756 + $0x20] sm:$0xff]
          %v762 = vld [vmem:[%s756 + $0x28] sm:$0xff]
          %v763 = vld [vmem:[%s756 + $0x30] sm:$0xff]
          %v764 = vld [vmem:[%s756 + $0x38] sm:$0xff]
          %v765 = vld [vmem:[%s756 + $0x40] sm:$0xff]
          %v766 = vld [vmem:[%s756 + $0x48] sm:$0xff]
          %v767 = vld [vmem:[%s756 + $0x50] sm:$0xff]
          %v768 = vld [vmem:[%s756 + $0x58] sm:$0xff]
          %v769 = vld [vmem:[%s756 + $0x60] sm:$0xff]
          %v770 = vld [vmem:[%s756 + $0x68] sm:$0xff]
          %v771 = vld [vmem:[%s756 + $0x70] sm:$0xff]
          %v772 = vld [vmem:[%s756 + $0x78] sm:$0xff]
          %v774 = vlaneseq
          %v775 = vshrl.u32 %v774, 7
          %v776 = vsub.s32 0, %v775
          %v777 = vrot.slane %v322, %v776
          %779 = vmatprep.subr.mxu0 0.0
          %780 = vmatpush1.msra.mxu0 %v321
          %781 = vmatprep.subr.mxu0 0.0
          %782 = vmatpush1.msra.mxu0 %v320
          %783 = vmatprep.subr.mxu0 0.0
          %784 = vmatpush1.msra.mxu0 %v319
          %785 = vmatprep.subr.mxu0 0.0
          %786 = vmatpush1.msra.mxu0 %v318
          %787 = vmatprep.subr.mxu0 0.0
          %788 = vmatpush1.msra.mxu0 %v317
          %789 = vmatprep.subr.mxu0 0.0
          %790 = vmatpush1.msra.mxu0 %v316
          %791 = vmatprep.subr.mxu0 0.0
          %792 = vmatpush1.msra.mxu0 %v315
          %793 = vmatprep.subr.mxu0 0.0
          %794 = vmatpush1.msra.mxu0 %v314
          %795 = vmatprep.subr.mxu0 0.0
          %796 = vmatpush1.msra.mxu0 %v313
          %797 = vmatprep.subr.mxu0 0.0
          %798 = vmatpush1.msra.mxu0 %v312
          %799 = vmatprep.subr.mxu0 0.0
          %800 = vmatpush1.msra.mxu0 %v311
          %801 = vmatprep.subr.mxu0 0.0
          %802 = vmatpush1.msra.mxu0 %v310
          %803 = vmatprep.subr.mxu0 0.0
          %804 = vmatpush1.msra.mxu0 %v309
          %805 = vmatprep.subr.mxu0 0.0
          %806 = vmatpush1.msra.mxu0 %v308
          %807 = vmatprep.subr.mxu0 0.0
          %808 = vmatpush1.msra.mxu0 %v307
          %809 = vmatprep.subr.mxu0 0.0
          %810 = vmatpush1.msra.mxu0 %v306
          %811 = vmatprep.subr.mxu0 0.0
          %812 = vmatpush2.msra.mxu0 0.0
          %813 = vmatprep.subr.mxu0 0.0
          %814 = vmatpush2.msra.mxu0 0.0
          %815 = vmatprep.subr.mxu0 0.0
          %816 = vmatpush2.msra.mxu0 0.0
          %817 = vmatprep.subr.mxu0 0.0
          %818 = vmatpush2.msra.mxu0 0.0
          %819 = vmatprep.subr.mxu0 0.0
          %820 = vmatpush2.msra.mxu0 0.0
          %821 = vmatprep.subr.mxu0 0.0
          %822 = vmatpush2.msra.mxu0 0.0
          %823 = vmatprep.subr.mxu0 0.0
          %824 = vmatpush2.msra.mxu0 0.0
          %825 = vmatprep.subr.mxu0 0.0
          %826 = vmatpush2.msra.mxu0 0.0
          %827 = vmatprep.subr.mxu0 0.0
          %828 = vmatpush2.msra.mxu0 0.0
          %829 = vmatprep.subr.mxu0 0.0
          %830 = vmatpush2.msra.mxu0 0.0
          %831 = vmatprep.subr.mxu0 0.0
          %832 = vmatpush2.msra.mxu0 0.0
          %833 = vmatprep.subr.mxu0 0.0
          %834 = vmatpush2.msra.mxu0 0.0
          %835 = vmatprep.subr.mxu0 0.0
          %836 = vmatpush2.msra.mxu0 0.0
          %837 = vmatprep.subr.mxu0 0.0
          %838 = vmatpush2.msra.mxu0 0.0
          %839 = vmatprep.subr.mxu0 0.0
          %840 = vmatpush2.msra.mxu0 0.0
          %841 = vmatprep.subr.mxu0 0.0
          %842 = vmatpush2.msra.mxu0 0.0
          %843 = vmatprep.mubr.f32.mxu0 0.0
          %844 = vmatmul.mubr.f32.gmra.mxu0 %v757
          %v845 = vpop.f32.mrf.mxu0
          %v846 = vadd.f32 %v777, %v845
          %v847 = vpop.f32.mrf.mxu0
          %848 = vmatprep.mubr.f32.mxu0 0.0
          %849 = vmatmul.mubr.f32.gmra.mxu0 %v758
          %v850 = vpop.f32.mrf.mxu0
          %v851 = vadd.f32 %v777, %v850
          %v852 = vpop.f32.mrf.mxu0
          %853 = vmatprep.mubr.f32.mxu0 0.0
          %854 = vmatmul.mubr.f32.gmra.mxu0 %v759
          %v855 = vpop.f32.mrf.mxu0
          %v856 = vadd.f32 %v777, %v855
          %v857 = vpop.f32.mrf.mxu0
          %858 = vmatprep.mubr.f32.mxu0 0.0
          %859 = vmatmul.mubr.f32.gmra.mxu0 %v760
          %v860 = vpop.f32.mrf.mxu0
          %v861 = vadd.f32 %v777, %v860
          %v862 = vpop.f32.mrf.mxu0
          %863 = vmatprep.mubr.f32.mxu0 0.0
          %864 = vmatmul.mubr.f32.gmra.mxu0 %v761
          %v865 = vpop.f32.mrf.mxu0
          %v866 = vadd.f32 %v777, %v865
          %v867 = vpop.f32.mrf.mxu0
          %868 = vmatprep.mubr.f32.mxu0 0.0
          %869 = vmatmul.mubr.f32.gmra.mxu0 %v762
          %v870 = vpop.f32.mrf.mxu0
          %v871 = vadd.f32 %v777, %v870
          %v872 = vpop.f32.mrf.mxu0
          %873 = vmatprep.mubr.f32.mxu0 0.0
          %874 = vmatmul.mubr.f32.gmra.mxu0 %v763
          %v875 = vpop.f32.mrf.mxu0
          %v876 = vadd.f32 %v777, %v875
          %v877 = vpop.f32.mrf.mxu0
          %878 = vmatprep.mubr.f32.mxu0 0.0
          %879 = vmatmul.mubr.f32.gmra.mxu0 %v764
          %v880 = vpop.f32.mrf.mxu0
          %v881 = vadd.f32 %v777, %v880
          %v882 = vpop.f32.mrf.mxu0
          %883 = vmatprep.mubr.f32.mxu0 0.0
          %884 = vmatmul.mubr.f32.gmra.mxu0 %v765
          %v885 = vpop.f32.mrf.mxu0
          %v886 = vadd.f32 %v777, %v885
          %v887 = vpop.f32.mrf.mxu0
          %888 = vmatprep.mubr.f32.mxu0 0.0
          %889 = vmatmul.mubr.f32.gmra.mxu0 %v766
          %v890 = vpop.f32.mrf.mxu0
          %v891 = vadd.f32 %v777, %v890
          %v892 = vpop.f32.mrf.mxu0
          %893 = vmatprep.mubr.f32.mxu0 0.0
          %894 = vmatmul.mubr.f32.gmra.mxu0 %v767
          %v895 = vpop.f32.mrf.mxu0
          %v896 = vadd.f32 %v777, %v895
          %v897 = vpop.f32.mrf.mxu0
          %898 = vmatprep.mubr.f32.mxu0 0.0
          %899 = vmatmul.mubr.f32.gmra.mxu0 %v768
          %v900 = vpop.f32.mrf.mxu0
          %v901 = vadd.f32 %v777, %v900
          %v902 = vpop.f32.mrf.mxu0
          %903 = vmatprep.mubr.f32.mxu0 0.0
          %904 = vmatmul.mubr.f32.gmra.mxu0 %v769
          %v905 = vpop.f32.mrf.mxu0
          %v906 = vadd.f32 %v777, %v905
          %v907 = vpop.f32.mrf.mxu0
          %908 = vmatprep.mubr.f32.mxu0 0.0
          %909 = vmatmul.mubr.f32.gmra.mxu0 %v770
          %v910 = vpop.f32.mrf.mxu0
          %v911 = vadd.f32 %v777, %v910
          %v912 = vpop.f32.mrf.mxu0
          %913 = vmatprep.mubr.f32.mxu0 0.0
          %914 = vmatmul.mubr.f32.gmra.mxu0 %v771
          %v915 = vpop.f32.mrf.mxu0
          %v916 = vadd.f32 %v777, %v915
          %v917 = vpop.f32.mrf.mxu0
          %918 = vmatprep.mubr.f32.mxu0 0.0
          %919 = vmatmul.mubr.f32.gmra.mxu0 %v772
          %v920 = vpop.f32.mrf.mxu0
          %v921 = vadd.f32 %v777, %v920
          %v922 = vpop.f32.mrf.mxu0
          %923 = vdwg.mxu0
          %s924 = scalar_lea.vmem [#allocation9], %s266
          %925 = vst [vmem:[%s924] sm:$0xff] %v846
          %926 = vst [vmem:[%s924 + $0x8] sm:$0xff] %v851
          %927 = vst [vmem:[%s924 + $0x10] sm:$0xff] %v856
          %928 = vst [vmem:[%s924 + $0x18] sm:$0xff] %v861
          %929 = vst [vmem:[%s924 + $0x20] sm:$0xff] %v866
          %930 = vst [vmem:[%s924 + $0x28] sm:$0xff] %v871
          %931 = vst [vmem:[%s924 + $0x30] sm:$0xff] %v876
          %932 = vst [vmem:[%s924 + $0x38] sm:$0xff] %v881
          %933 = vst [vmem:[%s924 + $0x40] sm:$0xff] %v886
          %934 = vst [vmem:[%s924 + $0x48] sm:$0xff] %v891
          %935 = vst [vmem:[%s924 + $0x50] sm:$0xff] %v896
          %936 = vst [vmem:[%s924 + $0x58] sm:$0xff] %v901
          %937 = vst [vmem:[%s924 + $0x60] sm:$0xff] %v906
          %938 = vst [vmem:[%s924 + $0x68] sm:$0xff] %v911
          %939 = vst [vmem:[%s924 + $0x70] sm:$0xff] %v916
          %940 = vst [vmem:[%s924 + $0x78] sm:$0xff] %v921
        $region60: #{tpu_custom_call.1} parent=35 // pred_fallthru
          _
        // Predicated region
        $region61: #{tpu_custom_call.1} parent=35 // pred_check
          %p941 = pneg %p142
        $region62: #{tpu_custom_call.1} parent=35 // pred_check_branch
          %943 = sbr.rel (%p941) target = $region64
        $region63: #{tpu_custom_call.1} parent=35 // pred_region
          %s945 = ssub.s32 2048, 2048
          %946 = vsyncadd [#allocation5], %s945
          %s947 = sshll.u32 [#allocation9], 4
          %s948 = int_to_ptr.vmem [resolvable:$true] %s947
          %953 = dma.vmem_to_hbm [thread:$0]  %s948, 2048, %s4, [#allocation5], 128, 128, 8
        $region64: #{tpu_custom_call.1} parent=35 // pred_fallthru
          _
        // Predicated region
        $region65: #{tpu_custom_call.1} parent=35 // pred_check
          %p954 = pneg %p142
        $region66: #{tpu_custom_call.1} parent=35 // pred_check_branch
          %956 = sbr.rel (%p954) target = $region68
        $region67: #{tpu_custom_call.1} parent=35 // pred_region
          %957 = dma.done [#allocation5], 2048
        $region68: #{tpu_custom_call.1} parent=35 // pred_fallthru
          _
      $region36: #{tpu_custom_call.1} parent=5 // pred_fallthru
        _
      %p958 = scmp.le.s32.totalorder 2, %s13
      // Predicated region
      $region69: #{tpu_custom_call.1} parent=5 // pred_check
        %p959 = pneg %p958
      $region70: #{tpu_custom_call.1} parent=5 // pred_check_branch
        %961 = sbr.rel (%p959) target = $region72
      $region71: #{tpu_custom_call.1} parent=5 // pred_region
        %s962 = ssub.s32 %s13, 2
      $region72: #{tpu_custom_call.1} parent=5 // pred_fallthru
        _
    $region6: #{tpu_custom_call.1} parent=1 // loop_footer
      %s17 = sadd.s32 1, %s13
    $region7: #{tpu_custom_call.1} parent=1 // loop_footer_branch
      %12 = sbr.rel target = $region3
    $region8: #{tpu_custom_call.1} parent=1 // loop_exit
      _
    %963 = vsyncpa [#allocation4], 1
    %s964 = scalar_lea.sflag [#allocation4], 1
    %965 = vsyncpa %s964, 1
    %966 = vsyncpa [#allocation7], 1
    %967 = vsyncpa [#allocation5], 1
    %s968 = scalar_lea.sflag [#allocation5], 1
    %969 = vsyncpa %s968, 1

</llo_original>
